<compile_context>
chip_gen: v6e
topology: v6e:2x2x1
jax: 0.10.0
libtpu: 0.0.40
codegen_flags: <defaults>
</compile_context>

<pallas_src>
import functools
import math

import jax
import jax.numpy as jnp
from jax import lax
from jax.experimental import pallas as pl
from jax.experimental.pallas import tpu as pltpu


def _round_up(a, b):
    return -(-a // b) * b


def _pick_toh(oh, ow, target_m=256, max_m=2048):
    """Pick the OH band height so the flattened matmul M = toh*ow fills the MXU
    (>=256 rows for v6e/v7x's 256-wide MXUs; 128 already fills v5e), preferring
    divisors of OH (no padded output rows) with toh*ow a multiple of 8 (block rule)."""
    cands = [d for d in range(1, oh + 1)
             if oh % d == 0 and (d * ow) % 8 == 0 and d * ow <= max_m]
    for d in cands:
        if d * ow >= target_m:
            return d
    if cands:
        return cands[-1]
    return oh  # single full-height band (block == full dim, no divisibility rule)


def _block_vmem_bytes(shape, dtype):
    """Rough VMEM footprint of one block, including (sublane, lane) tile padding."""
    itemsize = jnp.dtype(dtype).itemsize
    dims = list(shape)
    if len(dims) >= 2:
        dims[-1] = _round_up(dims[-1], 128)
        dims[-2] = _round_up(dims[-2], 8 * max(1, 4 // itemsize))
    elif dims:
        dims[-1] = _round_up(dims[-1], 128)
    return (int(math.prod(dims)) if dims else 1) * itemsize


def _vmem_limit_bytes(block_bytes):
    """Need-based VMEM limit (double-buffered blocks + scratch headroom), capped well
    under the smallest per-core VMEM (64 MiB on v7x) instead of a hard-coded 48 MiB."""
    need = 2 * sum(block_bytes) + (4 << 20)
    try:
        cap = int(getattr(pltpu.get_tpu_info(), "vmem_capacity_bytes", 64 << 20))
    except Exception:
        cap = 64 << 20
    return int(min(max(need, 8 << 20), int(cap * 0.7), 96 << 20))


def _conv_kernel(x_ref, w_ref, shift_ref, o_ref, *,
                 taps, stride, dilation, toh, ow, relu, banded):
    """One (image, C_out tile, OH band) grid step.

    banded=True : x_ref is the exact (TOH*OW, KH*KW*C_in) activation band produced by
                  wrapper-side im2col (or a 1x1 conv) -> ONE MXU matmul, M=TOH*OW.
    banded=False: x_ref is the whole padded (HP, WP, C_in) image; one matmul per tap
                  with M=TOH*OW, K=C_in (used when C_in is already lane-dense).
    """
    m, tn = o_ref.shape
    # Fold the bias / BN shift into the accumulator init: one add, outside all loops.
    acc = jnp.broadcast_to(shift_ref[...], (m, tn))
    if banded:
        acc = acc + jnp.dot(x_ref[...], w_ref[0],
                            preferred_element_type=jnp.float32)
    else:
        oh0 = pl.program_id(2) * toh
        for t, (ih, iw) in enumerate(taps):          # static tap loop (KH*KW)
            row0 = oh0 * stride + ih * dilation
            col0 = iw * dilation
            if stride == 1:
                band = x_ref[pl.ds(row0, toh), pl.ds(col0, ow), :]
            else:
                # TODO(synk): stride>1 large-C_in path uses strided band reads (one per
                # tap per band, not per row); unexercised by the test below.
                band = x_ref[pl.ds(row0, toh, stride=stride),
                             pl.ds(col0, ow, stride=stride), :]
            acc = acc + jnp.dot(band.reshape(m, band.shape[-1]), w_ref[t],
                                preferred_element_type=jnp.float32)
    if relu:
        acc = jnp.maximum(acc, 0.0)
    o_ref[...] = acc.astype(o_ref.dtype)


def prepare_conv2d_params(weight, bias, *, groups=1, bn_params=None,
                          tn=128, compute_dtype=jnp.bfloat16, banded=None):
    """Fold bias / eval-mode BN into (scale, shift), fold the scale into the weight,
    and lay the weight out as MXU-ready matrices padded to 128 output lanes.
    Done ONCE (at module init) so the per-call wrapper does no weight re-layout."""
    c_out, c_in_g, kh, kw = weight.shape
    weight = weight.astype(jnp.float32)
    bias = bias.astype(jnp.float32)

    if bn_params is not None:
        gamma, beta, r_mean, r_var, eps = bn_params
        scale = gamma / jnp.sqrt(r_var + eps)
        shift = scale * (bias - r_mean) + beta
        # TODO(synk): eval-mode BN fold only; train-mode (momentum=0) batch statistics
        # would need a cross-batch reduction pass.
    else:
        scale = jnp.ones((c_out,), jnp.float32)
        shift = bias
    w_scaled = weight * scale[:, None, None, None]

    if banded is None:
        # Lane-sparse C_in (or a plain 1x1 conv) -> wrapper-im2col / banded path.
        banded = (c_in_g < 128) or (kh == 1 and kw == 1)

    oc_per_g = c_out // groups
    cout_pad = _round_up(oc_per_g, tn)

    group_params = []
    for g in range(groups):
        wg = w_scaled[g * oc_per_g:(g + 1) * oc_per_g]     # (ocg, icg, kh, kw)
        sg = shift[g * oc_per_g:(g + 1) * oc_per_g]
        w_t = jnp.transpose(wg, (2, 3, 1, 0))              # (kh, kw, icg, ocg)
        if banded:
            w_t = w_t.reshape(1, kh * kw * c_in_g, oc_per_g)
        else:
            w_t = w_t.reshape(kh * kw, c_in_g, oc_per_g)
        w_t = jnp.pad(w_t, ((0, 0), (0, 0), (0, cout_pad - oc_per_g)))
        w_t = w_t.astype(compute_dtype)
        s2d = jnp.pad(sg, (0, cout_pad - oc_per_g)).reshape(1, cout_pad)
        group_params.append((w_t, s2d))

    meta = dict(kh=kh, kw=kw, groups=groups, banded=banded, tn=tn,
                compute_dtype=compute_dtype, c_out=c_out)
    return group_params, meta


def _run_group(xg, w_prep, shift2d, *, banded, kh, kw, stride, padding, dilation,
               relu, tn, compute_dtype, toh=None):
    """Run the conv for one channel group. xg: (N, H, W, C_in_g) NHWC float32."""
    n, h, w, icg = xg.shape
    cout_pad = w_prep.shape[-1]
    oh = (h + 2 * padding - dilation * (kh - 1) - 1) // stride + 1
    ow = (w + 2 * padding - dilation * (kw - 1) - 1) // stride + 1
    if toh is None:
        toh = _pick_toh(oh, ow)
    else:
        toh = min(toh, oh)
        if (toh * ow) % 8 != 0 and toh != oh:
            toh = _pick_toh(oh, ow)
    oh_pad = _round_up(oh, toh)
    m = toh * ow
    ntaps = kh * kw

    if banded:
        # Wrapper-side im2col for lane-sparse C_in: taps + C_in folded into the matmul
        # K dimension, activation minor dim is KH*KW*C_in (dense), and H is row-band
        # tiled by the BlockSpec (no whole-image VMEM residency).
        xp = jnp.pad(xg, ((0, 0), (padding, padding), (padding, padding), (0, 0)))
        cols = [xp[:, ih * dilation: ih * dilation + (oh - 1) * stride + 1: stride,
                   iw * dilation: iw * dilation + (ow - 1) * stride + 1: stride, :]
                for ih in range(kh) for iw in range(kw)]
        x_cols = cols[0] if ntaps == 1 else jnp.concatenate(cols, axis=-1)
        x_cols = jnp.pad(x_cols, ((0, 0), (0, oh_pad - oh), (0, 0), (0, 0)))
        k_eff = ntaps * icg
        x_in = x_cols.reshape(n, oh_pad * ow, k_eff).astype(compute_dtype)
        x_spec = pl.BlockSpec((None, m, k_eff), lambda b, j, i: (b, i, 0))
        w_spec = pl.BlockSpec((1, k_eff, tn), lambda b, j, i: (0, 0, j))
        x_blk_shape = (m, k_eff)
        taps = ((0, 0),)
        k_stride = k_dil = 1
    else:
        # Lane-dense C_in (>= 128): keep the padded image VMEM-resident (avoids the
        # KH*KW im2col HBM blowup) and accumulate one matmul per tap, K = C_in.
        # TODO(synk): for very large images replace whole-image residency with halo'd
        # row-band blocks (pl.Element offsets) to bound VMEM on v7x (64 MiB/TC).
        hp_need = (oh_pad - 1) * stride + (kh - 1) * dilation + 1
        pad_h_hi = max(padding, hp_need - h - padding)
        x_in = jnp.pad(xg, ((0, 0), (padding, pad_h_hi),
                            (padding, padding), (0, 0))).astype(compute_dtype)
        hp2, wp = x_in.shape[1], x_in.shape[2]
        x_spec = pl.BlockSpec((None, hp2, wp, icg), lambda b, j, i: (b, 0, 0, 0))
        w_spec = pl.BlockSpec((ntaps, icg, tn), lambda b, j, i: (0, 0, j))
        x_blk_shape = (hp2, wp, icg)
        taps = tuple((ih, iw) for ih in range(kh) for iw in range(kw))
        k_stride, k_dil = stride, dilation

    kernel = functools.partial(_conv_kernel, taps=taps, stride=k_stride,
                               dilation=k_dil, toh=toh, ow=ow, relu=relu,
                               banded=banded)

    grid = (n, cout_pad // tn, oh_pad // toh)
    flops = 2 * n * oh * ow * icg * ntaps * cout_pad
    out_itemsize = jnp.dtype(compute_dtype).itemsize
    bytes_accessed = int(x_in.size * x_in.dtype.itemsize
                         + w_prep.size * w_prep.dtype.itemsize
                         + n * oh_pad * ow * cout_pad * out_itemsize)

    vmem_limit = _vmem_limit_bytes([
        _block_vmem_bytes(x_blk_shape, compute_dtype),
        _block_vmem_bytes(tuple(w_prep.shape[:-1]) + (tn,), compute_dtype),
        _block_vmem_bytes((1, tn), jnp.float32),
        _block_vmem_bytes((m, tn), compute_dtype),
    ])

    out_flat = pl.pallas_call(
        kernel,
        out_shape=jax.ShapeDtypeStruct((n, oh_pad * ow, cout_pad), compute_dtype),
        grid_spec=pltpu.PrefetchScalarGridSpec(
            num_scalar_prefetch=0,
            grid=grid,
            in_specs=[x_spec, w_spec,
                      pl.BlockSpec((1, tn), lambda b, j, i: (0, j))],
            out_specs=pl.BlockSpec((None, m, tn), lambda b, j, i: (b, i, j)),
        ),
        compiler_params=pltpu.CompilerParams(
            # Batch (then C_out tiles) leads so megacore/v7x shards across images, not
            # OH bands -> per-TC working sets stay disjoint.
            dimension_semantics=("parallel", "parallel", "parallel"),
            vmem_limit_bytes=vmem_limit),
        cost_estimate=pl.CostEstimate(flops=flops, transcendentals=0,
                                      bytes_accessed=bytes_accessed),
    )(x_in, w_prep, shift2d)

    out = out_flat.reshape(n, oh_pad, ow, cout_pad)
    return out[:, :oh]          # drop padded OH rows; padded C_out lanes sliced later


def conv2d_apply(x, group_params, meta, *, stride=1, padding=0, dilation=1,
                 relu=True, toh=None):
    """x: (N, C_in, H, W) float32 NCHW -> (N, C_out, OH, OW) float32."""
    n, c_in, h, w = x.shape
    groups = meta["groups"]
    ic_per_g = c_in // groups
    oc_per_g = meta["c_out"] // groups
    x_nhwc = jnp.transpose(x, (0, 2, 3, 1))

    outs = []
    # TODO(synk): fuse the group loop into one grouped call (block-diagonal weight or
    # scalar-prefetched per-group offsets); groups == 1 (the common case) is unaffected.
    for g in range(groups):
        xg = x_nhwc[..., g * ic_per_g:(g + 1) * ic_per_g]
        w_prep, s2d = group_params[g]
        o = _run_group(xg, w_prep, s2d, banded=meta["banded"], kh=meta["kh"],
                       kw=meta["kw"], stride=stride, padding=padding,
                       dilation=dilation, relu=relu, tn=meta["tn"],
                       compute_dtype=meta["compute_dtype"], toh=toh)
        # TODO(synk): NHWC->NCHW transpose + f32 upcast kept in glue to mirror the
        # PyTorch module's NCHW float32 output; a NHWC consumer could skip both.
        outs.append(jnp.transpose(o[..., :oc_per_g], (0, 3, 1, 2)).astype(jnp.float32))
    return jnp.concatenate(outs, axis=1) if groups > 1 else outs[0]


def conv2d_pallas(x, weight, bias, *, stride=1, padding=0, dilation=1, groups=1,
                  relu=True, bn_params=None, toh=None, tn=128,
                  compute_dtype=jnp.bfloat16):
    """One-shot functional entry point (prepare + apply)."""
    params, meta = prepare_conv2d_params(
        weight, bias, groups=groups, bn_params=bn_params, tn=tn,
        compute_dtype=compute_dtype)
    return conv2d_apply(x, params, meta, stride=stride, padding=padding,
                        dilation=dilation, relu=relu, toh=toh)


class Conv2dPallas:
    """Mirror of the PyTorch Conv2d wrapper module (conv [+ eval-mode bn] [+ relu])."""

    def __init__(self, in_channels, out_channels, kernel_size, stride=1,
                 same_padding=False, dilation=1, groups=1, relu=True, bn=False,
                 key=None, compute_dtype=jnp.bfloat16):
        self.stride = stride
        self.dilation = dilation
        self.groups = groups
        self.relu = relu
        self.padding = int((kernel_size - 1) * dilation / 2) if same_padding else 0

        key = jax.random.PRNGKey(0) if key is None else key
        kw_, kb_ = jax.random.split(key)
        fan_in = (in_channels // groups) * kernel_size * kernel_size
        bound = 1.0 / math.sqrt(fan_in)
        self.weight = jax.random.uniform(
            kw_, (out_channels, in_channels // groups, kernel_size, kernel_size),
            jnp.float32, -bound, bound)
        self.bias = jax.random.uniform(kb_, (out_channels,), jnp.float32, -bound, bound)

        if bn:
            self.bn_params = (
                jnp.ones((out_channels,), jnp.float32),    # gamma
                jnp.zeros((out_channels,), jnp.float32),   # beta
                jnp.zeros((out_channels,), jnp.float32),   # running_mean
                jnp.ones((out_channels,), jnp.float32),    # running_var
                1e-3,
            )
        else:
            self.bn_params = None

        # Weight re-layout / BN fold / pad / dtype cast done ONCE here, not per call.
        self._params, self._meta = prepare_conv2d_params(
            self.weight, self.bias, groups=groups, bn_params=self.bn_params,
            compute_dtype=compute_dtype)

    def __call__(self, x):
        return conv2d_apply(x, self._params, self._meta, stride=self.stride,
                            padding=self.padding, dilation=self.dilation,
                            relu=self.relu)


if __name__ == "__main__":
    key = jax.random.PRNGKey(0)
    kx, kp = jax.random.split(key)

    # Small shapes: N=2, C_in=4, H=W=16, C_out=8, 3x3 conv, same padding, ReLU.
    x = jax.random.normal(kx, (2, 4, 16, 16), jnp.float32)
    module = Conv2dPallas(in_channels=4, out_channels=8, kernel_size=3,
                          stride=1, same_padding=True, relu=True, bn=False, key=kp)

    out = jax.block_until_ready(module(x))
    assert out.shape == (2, 8, 16, 16), out.shape

    def ref_conv(xr, wr):
        y = lax.conv_general_dilated(
            xr, wr, window_strides=(1, 1), padding=((1, 1), (1, 1)),
            rhs_dilation=(1, 1), dimension_numbers=("NCHW", "OIHW", "NCHW"))
        return jnp.maximum(y + module.bias.reshape(1, -1, 1, 1), 0.0)

    # Default path (bf16 compute + bf16 stores): compare against a reference on
    # bf16-rounded inputs with a tolerance covering the bf16 output rounding.
    x_bf = x.astype(jnp.bfloat16).astype(jnp.float32)
    w_bf = module.weight.astype(jnp.bfloat16).astype(jnp.float32)
    ref_bf = ref_conv(x_bf, w_bf)
    assert jnp.allclose(out, ref_bf, atol=2e-2, rtol=2e-2), \
        float(jnp.max(jnp.abs(out - ref_bf)))

    # float32 compute path: tight check against the full-precision reference.
    out_f32 = jax.block_until_ready(conv2d_pallas(
        x, module.weight, module.bias, stride=1, padding=1, relu=True,
        compute_dtype=jnp.float32))
    ref_f32 = ref_conv(x, module.weight)
    assert jnp.allclose(out_f32, ref_f32, atol=2e-4, rtol=2e-4), \
        float(jnp.max(jnp.abs(out_f32 - ref_f32)))

    print("KERNEL_OK")
</pallas_src>

<mosaic_0001>
module attributes {stable_mosaic.version = 11 : i64} {
  func.func @_conv_kernel(%arg0: i32, %arg1: i32, %arg2: i32, %arg3: memref<1x256x36xbf16, #tpu.memory_space<vmem>>, %arg4: memref<1x36x128xbf16, #tpu.memory_space<vmem>>, %arg5: memref<1x128xf32, #tpu.memory_space<vmem>>, %arg6: memref<1x256x128xbf16, #tpu.memory_space<vmem>>) attributes {dimension_semantics = [#tpu.dimension_semantics<parallel>, #tpu.dimension_semantics<parallel>, #tpu.dimension_semantics<parallel>], iteration_bounds = array<i64: 2, 1, 1>, scalar_prefetch = 0 : i64, scratch_operands = 0 : i64, tpu.core_type = #tpu.core_type<tc>, window_params = [{transform_indices = @transform_0, window_bounds = array<i64: 1, 256, 36>}, {transform_indices = @transform_1, window_bounds = array<i64: 1, 36, 128>}, {transform_indices = @transform_2, window_bounds = array<i64: 1, 128>}, {transform_indices = @transform_3, window_bounds = array<i64: 1, 256, 128>}]} {
    %c0 = arith.constant 0 : index
    %c0_0 = arith.constant 0 : index
    %0 = vector.load %arg5[%c0, %c0_0] : memref<1x128xf32, #tpu.memory_space<vmem>>, vector<1x128xf32>
    %1 = vector.shape_cast %0 : vector<1x128xf32> to vector<1x128xf32>
    %2 = vector.broadcast %1 : vector<1x128xf32> to vector<256x128xf32>
    %c0_1 = arith.constant 0 : index
    %c0_2 = arith.constant 0 : index
    %c0_3 = arith.constant 0 : index
    %3 = vector.load %arg3[%c0_1, %c0_2, %c0_3] : memref<1x256x36xbf16, #tpu.memory_space<vmem>>, vector<1x256x36xbf16>
    %4 = vector.shape_cast %3 : vector<1x256x36xbf16> to vector<256x36xbf16>
    %c0_4 = arith.constant 0 : index
    %c0_5 = arith.constant 0 : index
    %c0_6 = arith.constant 0 : index
    %5 = vector.load %arg4[%c0_4, %c0_5, %c0_6] : memref<1x36x128xbf16, #tpu.memory_space<vmem>>, vector<1x36x128xbf16>
    %6 = vector.shape_cast %5 : vector<1x36x128xbf16> to vector<36x128xbf16>
    %cst = arith.constant dense<0.000000e+00> : vector<256x128xf32>
    %7 = tpu.matmul %4, %6, %cst {dimension_numbers = #tpu.dot_dimension_numbers<[1], [0], [0], [1], [0, 0, 1, 1], [], []>} : vector<256x36xbf16>, vector<36x128xbf16>, vector<256x128xf32> -> vector<256x128xf32>
    %8 = arith.addf %2, %7 : vector<256x128xf32>
    %cst_7 = arith.constant 0.000000e+00 : f32
    %9 = vector.broadcast %cst_7 : f32 to vector<256x128xf32>
    %10 = arith.maximumf %8, %9 : vector<256x128xf32>
    %11 = arith.truncf %10 : vector<256x128xf32> to vector<256x128xbf16>
    %c0_8 = arith.constant 0 : index
    %c0_9 = arith.constant 0 : index
    %c0_10 = arith.constant 0 : index
    %12 = vector.load %arg6[%c0_8, %c0_9, %c0_10] : memref<1x256x128xbf16, #tpu.memory_space<vmem>>, vector<1x256x128xbf16>
    %13 = vector.shape_cast %12 : vector<1x256x128xbf16> to vector<256x128xbf16>
    %14 = vector.shape_cast %11 : vector<256x128xbf16> to vector<1x256x128xbf16>
    tpu.vector_store %arg6[%c0_8, %c0_9, %c0_10], %14 {strides = array<i32>} : memref<1x256x128xbf16, #tpu.memory_space<vmem>>, vector<1x256x128xbf16>,
    return
  }
  func.func @transform_0(%arg0: i32, %arg1: i32, %arg2: i32) -> (i32, i32, i32) {
    %c0_i32 = arith.constant 0 : i32
    %c0_i32_0 = arith.constant 0 : i32
    return %arg0, %arg2, %c0_i32 : i32, i32, i32
  }
  func.func @transform_1(%arg0: i32, %arg1: i32, %arg2: i32) -> (i32, i32, i32) {
    %c0_i32 = arith.constant 0 : i32
    %c0_i32_0 = arith.constant 0 : i32
    %c0_i32_1 = arith.constant 0 : i32
    return %c0_i32, %c0_i32_0, %arg1 : i32, i32, i32
  }
  func.func @transform_2(%arg0: i32, %arg1: i32, %arg2: i32) -> (i32, i32) {
    %c0_i32 = arith.constant 0 : i32
    %c0_i32_0 = arith.constant 0 : i32
    return %c0_i32, %arg1 : i32, i32
  }
  func.func @transform_3(%arg0: i32, %arg1: i32, %arg2: i32) -> (i32, i32, i32) {
    %c0_i32 = arith.constant 0 : i32
    return %arg0, %arg2, %arg1 : i32, i32, i32
  }
}

</mosaic_0001>

<llo_original>
// kernel: tpu_custom_call.1
$region0: #{tpu_custom_call.1}
  #allocation0 [shape = 'u32[]', space=smem, size = 0x4, offset = 0x4, fixed_abs, tag = 'smem constant byte address 0x4 - core index']
  #allocation1 [shape = 'u32[144,128]{1,0:T(1,128)}', space=vmem, size = 0x12000, scoped, tag = 'internal scratch']
  %s0 = inlined_call_operand.vmem [shape: bf16[2,256,36], index: 0, kind: input, shape index: {}]
  %s1 = inlined_call_operand.vmem [shape: bf16[1,36,128], index: 1, kind: input, shape index: {}]
  %s2 = inlined_call_operand.vmem [shape: f32[1,128], index: 2, kind: input, shape index: {}]
  %s3 = inlined_call_operand.hbm [shape: bf16[2,256,128], index: 3, kind: output, shape index: {}]
  %s4 = sld [smem:[#allocation0]]
  $region45: #{tpu_custom_call.1} parent=0
    _
  %s6 = ssub.s32 1, %s4
  %s7 = scalar_select 0, %s6, %s4
  $region1: #{tpu_custom_call.1} parent=0
    #allocation2 [shape = 'u8[131072]{0}', space=vmem, size = 0x20000, scoped, tag = 'output window, operand 0']
    #allocation3 [shape = 's32[2]{0}', space=sflag, size = 0x8, scoped, tag = 'scoped memory for tpu_custom_call.1']
    %8 = vsyncpa [#allocation3], 0
    %s9 = scalar_lea.sflag [#allocation3], 1
    %10 = vsyncpa %s9, 0
    loop: start=0, step=1, limit=4
    $region2: #{tpu_custom_call.1} parent=1 // loop_pre_header
      _
    $region3: #{tpu_custom_call.1} parent=1 // loop_header
      %s12 = sphi 0, %s16
      %p13 = scmp.ge.s32.totalorder %s12, 4
      %s19 = sphi 0, %s38
      %s20 = sphi 0, %s34
      %s21 = sphi 0, %s30
      %s22 = sphi 0, %s19
      %s23 = sphi 0, %s20
      %s24 = sphi 0, %s21
      %s25 = sphi 0, %s22
      %s26 = sphi 0, %s23
      %s27 = sphi 0, %s24
      %s43 = sphi 0, %s45
      %s46 = sphi 0, %s43
      %s47 = sphi 0, %s46
      %s63 = sphi 0, %s47
      %s69 = sphi 0, %s71
      %s72 = sphi 0, %s69
      %s73 = sphi 0, %s72
      %s89 = sphi 0, %s73
      %s95 = sphi 0, %s97
      %s98 = sphi 0, %s95
      %s99 = sphi 0, %s98
      %s115 = sphi 0, %s99
      %s125 = sphi 0, %s127
      %s128 = sphi 0, %s125
      %s129 = sphi 0, %s128
      %s145 = sphi 0, %s129
    $region4: #{tpu_custom_call.1} parent=1 // loop_header_branch
      %15 = sbr.rel (%p13) target = $region8
    $region5: #{tpu_custom_call.1} parent=1 // loop_body
      %s17 = ssub.s32 %s12, 1
      %s18 = ssub.s32 %s12, 2
      %s28 = sadd.s32 1, %s21
      %p29 = scmp.ge.s32.totalorder %s28, 1
      %s30 = scalar_select %p29, 0, %s28
      %s31 = sadd.s32 1, %s20
      %s32 = scalar_select %p29, %s31, %s20
      %p33 = scmp.ge.s32.totalorder %s32, 1
      %s34 = scalar_select %p33, 0, %s32
      %s35 = sadd.s32 1, %s19
      %s36 = scalar_select %p33, %s35, %s19
      %p37 = scmp.ge.s32.totalorder %s36, 2
      %s38 = scalar_select %p37, 0, %s36
      %s39 = ssub.s32 %s19, %s38
      %s40 = ssub.s32 %s21, %s30
      %s41 = sor.u32 %s39, %s40
      %p42 = scmp.eq.s32.totalorder %s41, 0
      %s44 = sadd.s32 %s43, 1
      %s45 = scalar_select %p42, %s43, %s44
      %p48 = pneg %p42
      %p49 = scmp.eq.s32.totalorder %s12, 1
      %p50 = por %p48, %p49
      %p51 = scmp.ne.s32.totalorder %s43, %s46
      %p52 = scmp.eq.s32.totalorder %s12, 0
      %p53 = por %p51, %p52
      %p54 = scmp.ne.s32.totalorder %s43, %s46
      %p55 = scmp.eq.s32.totalorder %s17, 1
      %p56 = por %p54, %p55
      %p57 = scmp.ne.s32.totalorder %s46, %s47
      %p58 = scmp.eq.s32.totalorder %s17, 0
      %p59 = por %p57, %p58
      %p60 = scmp.ne.s32.totalorder %s46, %s47
      %p61 = scmp.eq.s32.totalorder %s18, 1
      %p62 = por %p60, %p61
      %p64 = scmp.ne.s32.totalorder %s47, %s63
      %p65 = scmp.eq.s32.totalorder %s18, 0
      %p66 = por %p64, %p65
      %s67 = ssub.s32 %s20, %s34
      %p68 = scmp.eq.s32.totalorder %s67, 0
      %s70 = sadd.s32 %s69, 1
      %s71 = scalar_select %p68, %s69, %s70
      %p74 = pneg %p68
      %p75 = scmp.eq.s32.totalorder %s12, 1
      %p76 = por %p74, %p75
      %p77 = scmp.ne.s32.totalorder %s69, %s72
      %p78 = scmp.eq.s32.totalorder %s12, 0
      %p79 = por %p77, %p78
      %p80 = scmp.ne.s32.totalorder %s69, %s72
      %p81 = scmp.eq.s32.totalorder %s17, 1
      %p82 = por %p80, %p81
      %p83 = scmp.ne.s32.totalorder %s72, %s73
      %p84 = scmp.eq.s32.totalorder %s17, 0
      %p85 = por %p83, %p84
      %p86 = scmp.ne.s32.totalorder %s72, %s73
      %p87 = scmp.eq.s32.totalorder %s18, 1
      %p88 = por %p86, %p87
      %p90 = scmp.ne.s32.totalorder %s73, %s89
      %p91 = scmp.eq.s32.totalorder %s18, 0
      %p92 = por %p90, %p91
      %s93 = ssub.s32 %s20, %s34
      %p94 = scmp.eq.s32.totalorder %s93, 0
      %s96 = sadd.s32 %s95, 1
      %s97 = scalar_select %p94, %s95, %s96
      %p100 = pneg %p94
      %p101 = scmp.eq.s32.totalorder %s12, 1
      %p102 = por %p100, %p101
      %p103 = scmp.ne.s32.totalorder %s95, %s98
      %p104 = scmp.eq.s32.totalorder %s12, 0
      %p105 = por %p103, %p104
      %p106 = scmp.ne.s32.totalorder %s95, %s98
      %p107 = scmp.eq.s32.totalorder %s17, 1
      %p108 = por %p106, %p107
      %p109 = scmp.ne.s32.totalorder %s98, %s99
      %p110 = scmp.eq.s32.totalorder %s17, 0
      %p111 = por %p109, %p110
      %p112 = scmp.ne.s32.totalorder %s98, %s99
      %p113 = scmp.eq.s32.totalorder %s18, 1
      %p114 = por %p112, %p113
      %p116 = scmp.ne.s32.totalorder %s99, %s115
      %p117 = scmp.eq.s32.totalorder %s18, 0
      %p118 = por %p116, %p117
      %s119 = ssub.s32 %s19, %s38
      %s120 = ssub.s32 %s21, %s30
      %s121 = sor.u32 %s119, %s120
      %s122 = ssub.s32 %s20, %s34
      %s123 = sor.u32 %s121, %s122
      %p124 = scmp.eq.s32.totalorder %s123, 0
      %s126 = sadd.s32 %s125, 1
      %s127 = scalar_select %p124, %s125, %s126
      %p130 = pneg %p124
      %p131 = scmp.eq.s32.totalorder %s12, 1
      %p132 = por %p130, %p131
      %p133 = scmp.ne.s32.totalorder %s125, %s128
      %p134 = scmp.eq.s32.totalorder %s12, 0
      %p135 = por %p133, %p134
      %p136 = scmp.ne.s32.totalorder %s125, %s128
      %p137 = scmp.eq.s32.totalorder %s17, 1
      %p138 = por %p136, %p137
      %p139 = scmp.ne.s32.totalorder %s128, %s129
      %p140 = scmp.eq.s32.totalorder %s17, 0
      %p141 = por %p139, %p140
      %p142 = scmp.ne.s32.totalorder %s128, %s129
      %p143 = scmp.eq.s32.totalorder %s18, 1
      %p144 = por %p142, %p143
      %p146 = scmp.ne.s32.totalorder %s129, %s145
      %p147 = scmp.eq.s32.totalorder %s18, 0
      %p148 = por %p146, %p147
      %p149 = scmp.le.s32.totalorder 1, %s12
      %p150 = scmp.lt.s32.totalorder %s12, 3
      %p151 = pnand %p149, %p150
      %p152 = pneg %p151
      // Predicated region
      $region9: #{tpu_custom_call.1} parent=5 // pred_check
        _
      $region10: #{tpu_custom_call.1} parent=5 // pred_check_branch
        %154 = sbr.rel (%p151) target = $region12
      $region11: #{tpu_custom_call.1} parent=5 // pred_region
        %s155 = ssub.s32 %s12, 1
        // Predicated region
        $region13: #{tpu_custom_call.1} parent=11 // pred_check
          %p156 = pneg %p85
        $region14: #{tpu_custom_call.1} parent=11 // pred_check_branch
          %158 = sbr.rel (%p156) target = $region16
        $region15: #{tpu_custom_call.1} parent=11 // pred_region
          %p159 = scmp.lt.s32.totalorder %s23, 0
          %s160 = scalar_select %p159, %s23, 0
          %s161 = smul.addr %s160, 4
          %s162 = scalar_lea.vmem %s1, %s161
        $region16: #{tpu_custom_call.1} parent=11 // pred_fallthru
          _
        // Predicated region
        $region17: #{tpu_custom_call.1} parent=11 // pred_check
          %p163 = pneg %p111
        $region18: #{tpu_custom_call.1} parent=11 // pred_check_branch
          %165 = sbr.rel (%p163) target = $region20
        $region19: #{tpu_custom_call.1} parent=11 // pred_region
          %p166 = scmp.lt.s32.totalorder %s23, 0
          %s167 = scalar_select %p166, %s23, 0
          %s168 = scalar_lea.vmem %s2, %s167
        $region20: #{tpu_custom_call.1} parent=11 // pred_fallthru
          _
      $region12: #{tpu_custom_call.1} parent=5 // pred_fallthru
        _
      %p169 = scmp.lt.s32.totalorder %s12, 2
      // Predicated region
      $region21: #{tpu_custom_call.1} parent=5 // pred_check
        %p170 = pneg %p169
      $region22: #{tpu_custom_call.1} parent=5 // pred_check_branch
        %172 = sbr.rel (%p170) target = $region24
      $region23: #{tpu_custom_call.1} parent=5 // pred_region
        // Predicated region
        $region25: #{tpu_custom_call.1} parent=23 // pred_check
          %p173 = pneg %p53
        $region26: #{tpu_custom_call.1} parent=23 // pred_check_branch
          %175 = sbr.rel (%p173) target = $region28
        $region27: #{tpu_custom_call.1} parent=23 // pred_region
          %s176 = smul.u32 32, %s21
          %p177 = scmp.lt.s32.totalorder %s19, 1
          %s178 = scalar_select %p177, %s19, 1
          %p179 = scmp.lt.s32.totalorder %s176, 31
          %s180 = scalar_select %p179, %s176, 31
          %s181 = smul.addr %s178, 32
          %s182 = sadd.s32 %s180, %s181
          %s183 = smul.addr %s182, 4
          %s184 = scalar_lea.vmem %s0, %s183
          %s185 = smul.u32 32, %s21
        $region28: #{tpu_custom_call.1} parent=23 // pred_fallthru
          _
      $region24: #{tpu_custom_call.1} parent=5 // pred_fallthru
        _
      %p186 = scmp.le.s32.totalorder 1, %s12
      %p187 = scmp.lt.s32.totalorder %s12, 3
      %p188 = pnand %p186, %p187
      %p189 = pneg %p188
      // Predicated region
      $region29: #{tpu_custom_call.1} parent=5 // pred_check
        _
      $region30: #{tpu_custom_call.1} parent=5 // pred_check_branch
        %191 = sbr.rel (%p188) target = $region32
      $region31: #{tpu_custom_call.1} parent=5 // pred_region
        %s192 = ssub.s32 %s12, 1
        %s193 = smul.u32 32, %s24
        %p194 = scmp.lt.s32.totalorder %s22, 1
        %s195 = scalar_select %p194, %s22, 1
        %p196 = scmp.lt.s32.totalorder %s193, 31
        %s197 = scalar_select %p196, %s193, 31
        %s198 = smul.addr %s195, 32
        %s199 = sadd.s32 %s197, %s198
        %s200 = smul.addr %s199, 4
        %s201 = scalar_lea.vmem %s0, %s200
        %p202 = pneg %p59
        %p203 = pneg %p56
        %p204 = scmp.lt.s32.totalorder %s23, 0
        %s205 = scalar_select %p204, %s23, 0
        %s206 = smul.addr %s205, 4
        %s207 = scalar_lea.vmem %s1, %s206
        %p208 = pneg %p85
        %p209 = pneg %p82
        %p210 = scmp.lt.s32.totalorder %s23, 0
        %s211 = scalar_select %p210, %s23, 0
        %s212 = scalar_lea.vmem %s2, %s211
        %p213 = pneg %p111
        %p214 = pneg %p108
        %p215 = pneg %p141
        %p216 = pneg %p138
        %s217 = sand.u32 %s128, 1
        %s218 = scalar_lea.sflag [#allocation3], %s217
        %s219 = sand.u32 %s128, 1
        %s220 = smul.addr %s219, 128
        %s221 = scalar_lea.vmem [#allocation2], %s220
        %s222 = smul.u32 32, %s24
        %p223 = scmp.lt.s32.totalorder %s22, 1
        %s224 = scalar_select %p223, %s22, 1
        %p225 = scmp.lt.s32.totalorder %s222, 31
        %s226 = scalar_select %p225, %s222, 31
        %s227 = smul.addr %s224, 32
        %s228 = sadd.s32 %s226, %s227
        %s229 = smul.addr %s228, 4
        %s230 = scalar_lea.vmem %s0, %s229
        %s231 = smul.u32 32, %s24
        %p232 = scmp.lt.s32.totalorder %s23, 0
        %s233 = scalar_select %p232, %s23, 0
        %s234 = smul.addr %s233, 4
        %s235 = scalar_lea.vmem %s1, %s234
        %p236 = scmp.lt.s32.totalorder %s23, 0
        %s237 = scalar_select %p236, %s23, 0
        %s238 = scalar_lea.vmem %s2, %s237
        %s239 = smul.u32 32, %s24
        %v241 = vld [vmem:[%s238] sm:$0x1]
        %v243 = vlaneseq
        %v244 = vshrl.u32 %v243, 7
        %v245 = vsub.s32 0, %v244
        %v246 = vrot.slane %v241, %v245
        %v248 = vld [vmem:[%s230] sm:$0xf]
        %v249 = vld [vmem:[%s230 + $0x4] sm:$0xf]
        %v250 = vld [vmem:[%s230 + $0x8] sm:$0xf]
        %v251 = vld [vmem:[%s230 + $0xc] sm:$0xf]
        %v252 = vld [vmem:[%s230 + $0x10] sm:$0xf]
        %v253 = vld [vmem:[%s230 + $0x14] sm:$0xf]
        %v254 = vld [vmem:[%s230 + $0x18] sm:$0xf]
        %v255 = vld [vmem:[%s230 + $0x1c] sm:$0xf]
        %v256 = vld [vmem:[%s230 + $0x20] sm:$0xf]
        %v257 = vld [vmem:[%s230 + $0x24] sm:$0xf]
        %v258 = vld [vmem:[%s230 + $0x28] sm:$0xf]
        %v259 = vld [vmem:[%s230 + $0x2c] sm:$0xf]
        %v260 = vld [vmem:[%s230 + $0x30] sm:$0xf]
        %v261 = vld [vmem:[%s230 + $0x34] sm:$0xf]
        %v262 = vld [vmem:[%s230 + $0x38] sm:$0xf]
        %v263 = vld [vmem:[%s230 + $0x3c] sm:$0xf]
        %v264 = vld [vmem:[%s230 + $0x40] sm:$0xf]
        %v265 = vld [vmem:[%s230 + $0x44] sm:$0xf]
        %v266 = vld [vmem:[%s230 + $0x48] sm:$0xf]
        %v267 = vld [vmem:[%s230 + $0x4c] sm:$0xf]
        %v268 = vld [vmem:[%s230 + $0x50] sm:$0xf]
        %v269 = vld [vmem:[%s230 + $0x54] sm:$0xf]
        %v270 = vld [vmem:[%s230 + $0x58] sm:$0xf]
        %v271 = vld [vmem:[%s230 + $0x5c] sm:$0xf]
        %v272 = vld [vmem:[%s230 + $0x60] sm:$0xf]
        %v273 = vld [vmem:[%s230 + $0x64] sm:$0xf]
        %v274 = vld [vmem:[%s230 + $0x68] sm:$0xf]
        %v275 = vld [vmem:[%s230 + $0x6c] sm:$0xf]
        %v276 = vld [vmem:[%s230 + $0x70] sm:$0xf]
        %v277 = vld [vmem:[%s230 + $0x74] sm:$0xf]
        %v278 = vld [vmem:[%s230 + $0x78] sm:$0xf]
        %v279 = vld [vmem:[%s230 + $0x7c] sm:$0xf]
        %v280 = vld [vmem:[%s235] sm:$0xf]
        %v281 = vld [vmem:[%s235 + $0x4] sm:$0xf]
        %v282 = vld [vmem:[%s235 + $0x8] sm:$0xf]
        %v283 = vld [vmem:[%s235 + $0xc] sm:$0xf]
        %v284 = vld [vmem:[%s235 + $0x10] sm:$0x3]
        %v317 = vunpack.c.l.b16 %v248
        %v318 = vunpack.c.l.b16 %v249
        %v319 = vunpack.c.l.b16 %v250
        %v320 = vunpack.c.l.b16 %v251
        %v321 = vunpack.c.l.b16 %v252
        %v322 = vunpack.c.l.b16 %v253
        %v323 = vunpack.c.l.b16 %v254
        %v324 = vunpack.c.l.b16 %v255
        %v325 = vunpack.c.l.b16 %v256
        %v326 = vunpack.c.l.b16 %v257
        %v327 = vunpack.c.l.b16 %v258
        %v328 = vunpack.c.l.b16 %v259
        %v329 = vunpack.c.l.b16 %v260
        %v330 = vunpack.c.l.b16 %v261
        %v331 = vunpack.c.l.b16 %v262
        %v332 = vunpack.c.l.b16 %v263
        %v333 = vunpack.c.l.b16 %v264
        %v334 = vunpack.c.l.b16 %v265
        %v335 = vunpack.c.l.b16 %v266
        %v336 = vunpack.c.l.b16 %v267
        %v337 = vunpack.c.l.b16 %v268
        %v338 = vunpack.c.l.b16 %v269
        %v339 = vunpack.c.l.b16 %v270
        %v340 = vunpack.c.l.b16 %v271
        %v341 = vunpack.c.l.b16 %v272
        %v342 = vunpack.c.l.b16 %v273
        %v343 = vunpack.c.l.b16 %v274
        %v344 = vunpack.c.l.b16 %v275
        %v345 = vunpack.c.l.b16 %v276
        %v346 = vunpack.c.l.b16 %v277
        %v347 = vunpack.c.l.b16 %v278
        %v348 = vunpack.c.l.b16 %v279
        %v349 = vpack.c.b16 %v318, %v317
        %v350 = vpack.c.b16 %v320, %v319
        %v351 = vpack.c.b16 %v322, %v321
        %v352 = vpack.c.b16 %v324, %v323
        %v353 = vpack.c.b16 %v326, %v325
        %v354 = vpack.c.b16 %v328, %v327
        %v355 = vpack.c.b16 %v330, %v329
        %v356 = vpack.c.b16 %v332, %v331
        %v357 = vpack.c.b16 %v334, %v333
        %v358 = vpack.c.b16 %v336, %v335
        %v359 = vpack.c.b16 %v338, %v337
        %v360 = vpack.c.b16 %v340, %v339
        %v361 = vpack.c.b16 %v342, %v341
        %v362 = vpack.c.b16 %v344, %v343
        %v363 = vpack.c.b16 %v346, %v345
        %v364 = vpack.c.b16 %v348, %v347
        %v370 = vunpack.c.l.b16 %v280
        %v371 = vunpack.c.l.b16 %v281
        %v372 = vunpack.c.l.b16 %v282
        %v373 = vunpack.c.l.b16 %v283
        %v374 = vunpack.c.l.b16 %v284
        %v375 = vpack.c.b16 %v371, %v370
        %v376 = vpack.c.b16 %v373, %v372
        %v377 = vpack.c.b16 %v374, %v374
        %vm380 = vcmask 293888
        %v382 = vsel %vm380, %v349, 0
        %v385 = vsel %vm380, %v350, 0
        %v388 = vsel %vm380, %v351, 0
        %v391 = vsel %vm380, %v352, 0
        %v394 = vsel %vm380, %v353, 0
        %v397 = vsel %vm380, %v354, 0
        %v400 = vsel %vm380, %v355, 0
        %v403 = vsel %vm380, %v356, 0
        %v406 = vsel %vm380, %v357, 0
        %v409 = vsel %vm380, %v358, 0
        %v412 = vsel %vm380, %v359, 0
        %v415 = vsel %vm380, %v360, 0
        %v418 = vsel %vm380, %v361, 0
        %v421 = vsel %vm380, %v362, 0
        %v424 = vsel %vm380, %v363, 0
        %v427 = vsel %vm380, %v364, 0
        %vm429 = vcmask 1041408
        %v431 = vsel %vm429, %v377, 0
        %433 = vmatprep.subr.bf16.mxu0 0
        %434 = vmatpush1.bf16.msra.mxu0 0
        %435 = vmatprep.subr.bf16.mxu0 0
        %436 = vmatpush1.bf16.msra.mxu0 0
        %437 = vmatprep.subr.bf16.mxu0 0
        %438 = vmatpush1.bf16.msra.mxu0 0
        %439 = vmatprep.subr.bf16.mxu0 0
        %440 = vmatpush1.bf16.msra.mxu0 0
        %441 = vmatprep.subr.bf16.mxu0 0
        %442 = vmatpush1.bf16.msra.mxu0 0
        %443 = vmatprep.subr.bf16.mxu0 0
        %444 = vmatpush1.bf16.msra.mxu0 %v431
        %445 = vmatprep.subr.bf16.mxu0 0
        %446 = vmatpush1.bf16.msra.mxu0 %v376
        %447 = vmatprep.subr.bf16.mxu0 0
        %448 = vmatpush1.bf16.msra.mxu0 %v375
        %449 = vmatprep.subr.bf16.mxu0 0
        %450 = vmatpush2.bf16.msra.mxu0 0
        %451 = vmatprep.subr.bf16.mxu0 0
        %452 = vmatpush2.bf16.msra.mxu0 0
        %453 = vmatprep.subr.bf16.mxu0 0
        %454 = vmatpush2.bf16.msra.mxu0 0
        %455 = vmatprep.subr.bf16.mxu0 0
        %456 = vmatpush2.bf16.msra.mxu0 0
        %457 = vmatprep.subr.bf16.mxu0 0
        %458 = vmatpush2.bf16.msra.mxu0 0
        %459 = vmatprep.subr.bf16.mxu0 0
        %460 = vmatpush2.bf16.msra.mxu0 0
        %461 = vmatprep.subr.bf16.mxu0 0
        %462 = vmatpush2.bf16.msra.mxu0 0
        %463 = vmatprep.subr.bf16.mxu0 0
        %464 = vmatpush2.bf16.msra.mxu0 0
        %465 = vmatprep.mubr.bf16.mxu0 0
        %466 = vmatmul.mubr.bf16.gmra.mxu0 %v382
        %v467 = vpop.f32.mrf.mxu0
        %v468 = vadd.f32 0.0, %v467
        %v469 = vpop.f32.mrf.mxu0
        %v470 = vpop.f32.mrf.mxu0
        %v471 = vadd.f32 0.0, %v470
        %v472 = vpop.f32.mrf.mxu0
        %473 = vmatprep.mubr.bf16.mxu0 0
        %474 = vmatmul.mubr.bf16.gmra.mxu0 %v385
        %v475 = vpop.f32.mrf.mxu0
        %v476 = vadd.f32 0.0, %v475
        %v477 = vpop.f32.mrf.mxu0
        %v478 = vpop.f32.mrf.mxu0
        %v479 = vadd.f32 0.0, %v478
        %v480 = vpop.f32.mrf.mxu0
        %481 = vmatprep.mubr.bf16.mxu0 0
        %482 = vmatmul.mubr.bf16.gmra.mxu0 %v388
        %v483 = vpop.f32.mrf.mxu0
        %v484 = vadd.f32 0.0, %v483
        %v485 = vpop.f32.mrf.mxu0
        %v486 = vpop.f32.mrf.mxu0
        %v487 = vadd.f32 0.0, %v486
        %v488 = vpop.f32.mrf.mxu0
        %489 = vmatprep.mubr.bf16.mxu0 0
        %490 = vmatmul.mubr.bf16.gmra.mxu0 %v391
        %v491 = vpop.f32.mrf.mxu0
        %v492 = vadd.f32 0.0, %v491
        %v493 = vpop.f32.mrf.mxu0
        %v494 = vpop.f32.mrf.mxu0
        %v495 = vadd.f32 0.0, %v494
        %v496 = vpop.f32.mrf.mxu0
        %497 = vmatprep.mubr.bf16.mxu0 0
        %498 = vmatmul.mubr.bf16.gmra.mxu0 %v394
        %v499 = vpop.f32.mrf.mxu0
        %v500 = vadd.f32 0.0, %v499
        %v501 = vpop.f32.mrf.mxu0
        %v502 = vpop.f32.mrf.mxu0
        %v503 = vadd.f32 0.0, %v502
        %v504 = vpop.f32.mrf.mxu0
        %505 = vmatprep.mubr.bf16.mxu0 0
        %506 = vmatmul.mubr.bf16.gmra.mxu0 %v397
        %v507 = vpop.f32.mrf.mxu0
        %v508 = vadd.f32 0.0, %v507
        %v509 = vpop.f32.mrf.mxu0
        %v510 = vpop.f32.mrf.mxu0
        %v511 = vadd.f32 0.0, %v510
        %v512 = vpop.f32.mrf.mxu0
        %513 = vmatprep.mubr.bf16.mxu0 0
        %514 = vmatmul.mubr.bf16.gmra.mxu0 %v400
        %v515 = vpop.f32.mrf.mxu0
        %v516 = vadd.f32 0.0, %v515
        %v517 = vpop.f32.mrf.mxu0
        %v518 = vpop.f32.mrf.mxu0
        %v519 = vadd.f32 0.0, %v518
        %v520 = vpop.f32.mrf.mxu0
        %521 = vmatprep.mubr.bf16.mxu0 0
        %522 = vmatmul.mubr.bf16.gmra.mxu0 %v403
        %v523 = vpop.f32.mrf.mxu0
        %v524 = vadd.f32 0.0, %v523
        %v525 = vpop.f32.mrf.mxu0
        %v526 = vpop.f32.mrf.mxu0
        %v527 = vadd.f32 0.0, %v526
        %v528 = vpop.f32.mrf.mxu0
        %529 = vmatprep.mubr.bf16.mxu0 0
        %530 = vmatmul.mubr.bf16.gmra.mxu0 %v406
        %v531 = vpop.f32.mrf.mxu0
        %v532 = vadd.f32 0.0, %v531
        %v533 = vpop.f32.mrf.mxu0
        %v534 = vpop.f32.mrf.mxu0
        %v535 = vadd.f32 0.0, %v534
        %v536 = vpop.f32.mrf.mxu0
        %537 = vmatprep.mubr.bf16.mxu0 0
        %538 = vmatmul.mubr.bf16.gmra.mxu0 %v409
        %v539 = vpop.f32.mrf.mxu0
        %v540 = vadd.f32 0.0, %v539
        %v541 = vpop.f32.mrf.mxu0
        %v542 = vpop.f32.mrf.mxu0
        %v543 = vadd.f32 0.0, %v542
        %v544 = vpop.f32.mrf.mxu0
        %545 = vmatprep.mubr.bf16.mxu0 0
        %546 = vmatmul.mubr.bf16.gmra.mxu0 %v412
        %v547 = vpop.f32.mrf.mxu0
        %v548 = vadd.f32 0.0, %v547
        %v549 = vpop.f32.mrf.mxu0
        %v550 = vpop.f32.mrf.mxu0
        %v551 = vadd.f32 0.0, %v550
        %v552 = vpop.f32.mrf.mxu0
        %553 = vmatprep.mubr.bf16.mxu0 0
        %554 = vmatmul.mubr.bf16.gmra.mxu0 %v415
        %v555 = vpop.f32.mrf.mxu0
        %v556 = vadd.f32 0.0, %v555
        %v557 = vpop.f32.mrf.mxu0
        %v558 = vpop.f32.mrf.mxu0
        %v559 = vadd.f32 0.0, %v558
        %v560 = vpop.f32.mrf.mxu0
        %561 = vmatprep.mubr.bf16.mxu0 0
        %562 = vmatmul.mubr.bf16.gmra.mxu0 %v418
        %v563 = vpop.f32.mrf.mxu0
        %v564 = vadd.f32 0.0, %v563
        %v565 = vpop.f32.mrf.mxu0
        %v566 = vpop.f32.mrf.mxu0
        %v567 = vadd.f32 0.0, %v566
        %v568 = vpop.f32.mrf.mxu0
        %569 = vmatprep.mubr.bf16.mxu0 0
        %570 = vmatmul.mubr.bf16.gmra.mxu0 %v421
        %v571 = vpop.f32.mrf.mxu0
        %v572 = vadd.f32 0.0, %v571
        %v573 = vpop.f32.mrf.mxu0
        %v574 = vpop.f32.mrf.mxu0
        %v575 = vadd.f32 0.0, %v574
        %v576 = vpop.f32.mrf.mxu0
        %577 = vmatprep.mubr.bf16.mxu0 0
        %578 = vmatmul.mubr.bf16.gmra.mxu0 %v424
        %v579 = vpop.f32.mrf.mxu0
        %v580 = vadd.f32 0.0, %v579
        %v581 = vpop.f32.mrf.mxu0
        %v582 = vpop.f32.mrf.mxu0
        %v583 = vadd.f32 0.0, %v582
        %v584 = vpop.f32.mrf.mxu0
        %585 = vmatprep.mubr.bf16.mxu0 0
        %586 = vmatmul.mubr.bf16.gmra.mxu0 %v427
        %v587 = vpop.f32.mrf.mxu0
        %v588 = vadd.f32 0.0, %v587
        %v589 = vpop.f32.mrf.mxu0
        %v590 = vpop.f32.mrf.mxu0
        %v591 = vadd.f32 0.0, %v590
        %v592 = vpop.f32.mrf.mxu0
        %593 = vdwg.mxu0
        %v594 = vadd.f32 %v246, %v468
        %v595 = vadd.f32 %v246, %v471
        %v596 = vadd.f32 %v246, %v476
        %v597 = vadd.f32 %v246, %v479
        %v598 = vadd.f32 %v246, %v484
        %v599 = vadd.f32 %v246, %v487
        %v600 = vadd.f32 %v246, %v492
        %v601 = vadd.f32 %v246, %v495
        %v602 = vadd.f32 %v246, %v500
        %v603 = vadd.f32 %v246, %v503
        %v604 = vadd.f32 %v246, %v508
        %v605 = vadd.f32 %v246, %v511
        %v606 = vadd.f32 %v246, %v516
        %v607 = vadd.f32 %v246, %v519
        %v608 = vadd.f32 %v246, %v524
        %v609 = vadd.f32 %v246, %v527
        %v610 = vadd.f32 %v246, %v532
        %v611 = vadd.f32 %v246, %v535
        %v612 = vadd.f32 %v246, %v540
        %v613 = vadd.f32 %v246, %v543
        %v614 = vadd.f32 %v246, %v548
        %v615 = vadd.f32 %v246, %v551
        %v616 = vadd.f32 %v246, %v556
        %v617 = vadd.f32 %v246, %v559
        %v618 = vadd.f32 %v246, %v564
        %v619 = vadd.f32 %v246, %v567
        %v620 = vadd.f32 %v246, %v572
        %v621 = vadd.f32 %v246, %v575
        %v622 = vadd.f32 %v246, %v580
        %v623 = vadd.f32 %v246, %v583
        %v624 = vadd.f32 %v246, %v588
        %v625 = vadd.f32 %v246, %v591
        %v626 = vmax.f32 %v594, 0.0
        %v627 = vmax.f32 %v595, 0.0
        %v628 = vmax.f32 %v596, 0.0
        %v629 = vmax.f32 %v597, 0.0
        %v630 = vmax.f32 %v598, 0.0
        %v631 = vmax.f32 %v599, 0.0
        %v632 = vmax.f32 %v600, 0.0
        %v633 = vmax.f32 %v601, 0.0
        %v634 = vmax.f32 %v602, 0.0
        %v635 = vmax.f32 %v603, 0.0
        %v636 = vmax.f32 %v604, 0.0
        %v637 = vmax.f32 %v605, 0.0
        %v638 = vmax.f32 %v606, 0.0
        %v639 = vmax.f32 %v607, 0.0
        %v640 = vmax.f32 %v608, 0.0
        %v641 = vmax.f32 %v609, 0.0
        %v642 = vmax.f32 %v610, 0.0
        %v643 = vmax.f32 %v611, 0.0
        %v644 = vmax.f32 %v612, 0.0
        %v645 = vmax.f32 %v613, 0.0
        %v646 = vmax.f32 %v614, 0.0
        %v647 = vmax.f32 %v615, 0.0
        %v648 = vmax.f32 %v616, 0.0
        %v649 = vmax.f32 %v617, 0.0
        %v650 = vmax.f32 %v618, 0.0
        %v651 = vmax.f32 %v619, 0.0
        %v652 = vmax.f32 %v620, 0.0
        %v653 = vmax.f32 %v621, 0.0
        %v654 = vmax.f32 %v622, 0.0
        %v655 = vmax.f32 %v623, 0.0
        %v656 = vmax.f32 %v624, 0.0
        %v657 = vmax.f32 %v625, 0.0
        %v658 = vpack.c.bf16 %v627, %v626
        %v659 = vpack.c.bf16 %v629, %v628
        %v660 = vpack.c.bf16 %v631, %v630
        %v661 = vpack.c.bf16 %v633, %v632
        %v662 = vpack.c.bf16 %v635, %v634
        %v663 = vpack.c.bf16 %v637, %v636
        %v664 = vpack.c.bf16 %v639, %v638
        %v665 = vpack.c.bf16 %v641, %v640
        %v666 = vpack.c.bf16 %v643, %v642
        %v667 = vpack.c.bf16 %v645, %v644
        %v668 = vpack.c.bf16 %v647, %v646
        %v669 = vpack.c.bf16 %v649, %v648
        %v670 = vpack.c.bf16 %v651, %v650
        %v671 = vpack.c.bf16 %v653, %v652
        %v672 = vpack.c.bf16 %v655, %v654
        %v673 = vpack.c.bf16 %v657, %v656
        %v690 = vunpack.c.l.b16 %v658
        %v691 = vunpack.c.h.b16 %v658
        %v692 = vunpack.c.l.b16 %v659
        %v693 = vunpack.c.h.b16 %v659
        %v694 = vunpack.c.l.b16 %v660
        %v695 = vunpack.c.h.b16 %v660
        %v696 = vunpack.c.l.b16 %v661
        %v697 = vunpack.c.h.b16 %v661
        %v698 = vunpack.c.l.b16 %v662
        %v699 = vunpack.c.h.b16 %v662
        %v700 = vunpack.c.l.b16 %v663
        %v701 = vunpack.c.h.b16 %v663
        %v702 = vunpack.c.l.b16 %v664
        %v703 = vunpack.c.h.b16 %v664
        %v704 = vunpack.c.l.b16 %v665
        %v705 = vunpack.c.h.b16 %v665
        %v706 = vunpack.c.l.b16 %v666
        %v707 = vunpack.c.h.b16 %v666
        %v708 = vunpack.c.l.b16 %v667
        %v709 = vunpack.c.h.b16 %v667
        %v710 = vunpack.c.l.b16 %v668
        %v711 = vunpack.c.h.b16 %v668
        %v712 = vunpack.c.l.b16 %v669
        %v713 = vunpack.c.h.b16 %v669
        %v714 = vunpack.c.l.b16 %v670
        %v715 = vunpack.c.h.b16 %v670
        %v716 = vunpack.c.l.b16 %v671
        %v717 = vunpack.c.h.b16 %v671
        %v718 = vunpack.c.l.b16 %v672
        %v719 = vunpack.c.h.b16 %v672
        %v720 = vunpack.c.l.b16 %v673
        %v721 = vunpack.c.h.b16 %v673
        %v722 = vpack.c.b16 %v690, %v690
        %v723 = vpack.c.b16 %v691, %v691
        %v724 = vpack.c.b16 %v692, %v692
        %v725 = vpack.c.b16 %v693, %v693
        %v726 = vpack.c.b16 %v694, %v694
        %v727 = vpack.c.b16 %v695, %v695
        %v728 = vpack.c.b16 %v696, %v696
        %v729 = vpack.c.b16 %v697, %v697
        %v730 = vpack.c.b16 %v698, %v698
        %v731 = vpack.c.b16 %v699, %v699
        %v732 = vpack.c.b16 %v700, %v700
        %v733 = vpack.c.b16 %v701, %v701
        %v734 = vpack.c.b16 %v702, %v702
        %v735 = vpack.c.b16 %v703, %v703
        %v736 = vpack.c.b16 %v704, %v704
        %v737 = vpack.c.b16 %v705, %v705
        %v738 = vpack.c.b16 %v706, %v706
        %v739 = vpack.c.b16 %v707, %v707
        %v740 = vpack.c.b16 %v708, %v708
        %v741 = vpack.c.b16 %v709, %v709
        %v742 = vpack.c.b16 %v710, %v710
        %v743 = vpack.c.b16 %v711, %v711
        %v744 = vpack.c.b16 %v712, %v712
        %v745 = vpack.c.b16 %v713, %v713
        %v746 = vpack.c.b16 %v714, %v714
        %v747 = vpack.c.b16 %v715, %v715
        %v748 = vpack.c.b16 %v716, %v716
        %v749 = vpack.c.b16 %v717, %v717
        %v750 = vpack.c.b16 %v718, %v718
        %v751 = vpack.c.b16 %v719, %v719
        %v752 = vpack.c.b16 %v720, %v720
        %v753 = vpack.c.b16 %v721, %v721
        %786 = vst [vmem:[%s221] sm:$0xf] %v722
        %787 = vst [vmem:[%s221 + $0x4] sm:$0xf] %v723
        %788 = vst [vmem:[%s221 + $0x8] sm:$0xf] %v724
        %789 = vst [vmem:[%s221 + $0xc] sm:$0xf] %v725
        %790 = vst [vmem:[%s221 + $0x10] sm:$0xf] %v726
        %791 = vst [vmem:[%s221 + $0x14] sm:$0xf] %v727
        %792 = vst [vmem:[%s221 + $0x18] sm:$0xf] %v728
        %793 = vst [vmem:[%s221 + $0x1c] sm:$0xf] %v729
        %794 = vst [vmem:[%s221 + $0x20] sm:$0xf] %v730
        %795 = vst [vmem:[%s221 + $0x24] sm:$0xf] %v731
        %796 = vst [vmem:[%s221 + $0x28] sm:$0xf] %v732
        %797 = vst [vmem:[%s221 + $0x2c] sm:$0xf] %v733
        %798 = vst [vmem:[%s221 + $0x30] sm:$0xf] %v734
        %799 = vst [vmem:[%s221 + $0x34] sm:$0xf] %v735
        %800 = vst [vmem:[%s221 + $0x38] sm:$0xf] %v736
        %801 = vst [vmem:[%s221 + $0x3c] sm:$0xf] %v737
        %802 = vst [vmem:[%s221 + $0x40] sm:$0xf] %v738
        %803 = vst [vmem:[%s221 + $0x44] sm:$0xf] %v739
        %804 = vst [vmem:[%s221 + $0x48] sm:$0xf] %v740
        %805 = vst [vmem:[%s221 + $0x4c] sm:$0xf] %v741
        %806 = vst [vmem:[%s221 + $0x50] sm:$0xf] %v742
        %807 = vst [vmem:[%s221 + $0x54] sm:$0xf] %v743
        %808 = vst [vmem:[%s221 + $0x58] sm:$0xf] %v744
        %809 = vst [vmem:[%s221 + $0x5c] sm:$0xf] %v745
        %810 = vst [vmem:[%s221 + $0x60] sm:$0xf] %v746
        %811 = vst [vmem:[%s221 + $0x64] sm:$0xf] %v747
        %812 = vst [vmem:[%s221 + $0x68] sm:$0xf] %v748
        %813 = vst [vmem:[%s221 + $0x6c] sm:$0xf] %v749
        %814 = vst [vmem:[%s221 + $0x70] sm:$0xf] %v750
        %815 = vst [vmem:[%s221 + $0x74] sm:$0xf] %v751
        %816 = vst [vmem:[%s221 + $0x78] sm:$0xf] %v752
        %817 = vst [vmem:[%s221 + $0x7c] sm:$0xf] %v753
        %s818 = sand.u32 %s128, 1
        %s819 = scalar_lea.sflag [#allocation3], %s818
        %s820 = sand.u32 %s128, 1
        %s821 = smul.addr %s820, 128
        %s822 = scalar_lea.vmem [#allocation2], %s821
        // Predicated region
        $region33: #{tpu_custom_call.1} parent=31 // pred_check
          %p823 = pneg %p138
        $region34: #{tpu_custom_call.1} parent=31 // pred_check_branch
          %825 = sbr.rel (%p823) target = $region36
        $region35: #{tpu_custom_call.1} parent=31 // pred_region
          %s826 = smul.u32 32, %s24
          %s828 = ssub.s32 2048, 2048
          %829 = vsyncadd %s819, %s828
          %s830 = sadd.s32 %s23, %s826
          %s831 = smul.addr %s22, 32
          %s832 = sadd.s32 %s830, %s831
          %s833 = smul.addr %s832, 64
          %s834 = scalar_lea.hbm %s3, %s833
          %s835 = sshll.u32 %s822, 4
          %s836 = int_to_ptr.vmem [resolvable:$true] %s835
          %841 = dma.vmem_to_hbm [thread:$0]  %s836, 2048, %s834, %s819, 64, 64, 4
        $region36: #{tpu_custom_call.1} parent=31 // pred_fallthru
          _
      $region32: #{tpu_custom_call.1} parent=5 // pred_fallthru
        _
      %p842 = scmp.le.s32.totalorder 2, %s12
      // Predicated region
      $region37: #{tpu_custom_call.1} parent=5 // pred_check
        %p843 = pneg %p842
      $region38: #{tpu_custom_call.1} parent=5 // pred_check_branch
        %845 = sbr.rel (%p843) target = $region40
      $region39: #{tpu_custom_call.1} parent=5 // pred_region
        %s846 = ssub.s32 %s12, 2
        // Predicated region
        $region41: #{tpu_custom_call.1} parent=39 // pred_check
          %p847 = pneg %p144
        $region42: #{tpu_custom_call.1} parent=39 // pred_check_branch
          %849 = sbr.rel (%p847) target = $region44
        $region43: #{tpu_custom_call.1} parent=39 // pred_region
          %s850 = sand.u32 %s129, 1
          %s851 = scalar_lea.sflag [#allocation3], %s850
          %s852 = sand.u32 %s129, 1
          %s853 = smul.addr %s852, 128
          %s854 = scalar_lea.vmem [#allocation2], %s853
          %855 = dma.done %s851, 2048
        $region44: #{tpu_custom_call.1} parent=39 // pred_fallthru
          _
      $region40: #{tpu_custom_call.1} parent=5 // pred_fallthru
        _
    $region6: #{tpu_custom_call.1} parent=1 // loop_footer
      %s16 = sadd.s32 1, %s12
    $region7: #{tpu_custom_call.1} parent=1 // loop_footer_branch
      %11 = sbr.rel target = $region3
    $region8: #{tpu_custom_call.1} parent=1 // loop_exit
      _
    %856 = vsyncpa [#allocation3], 1
    %s857 = scalar_lea.sflag [#allocation3], 1
    %858 = vsyncpa %s857, 1

</llo_original>
